<compile_context>
chip_gen: v5e
topology: v5e:2x2
jax: 0.10.0
libtpu: 0.0.40
codegen_flags: <defaults>
</compile_context>

<pallas_src>
import functools
import math

import jax
import jax.numpy as jnp
from jax.experimental import pallas as pl
from jax.experimental.pallas import tpu as pltpu

_LANES = 128
_ROW_ALIGN = 16            # multiple of 16 keeps bf16/f16 sublane packing unmasked
_SMALL_N_THRESHOLD = 16384  # below this, pure-JAX fallback is faster than launch cost
_TILE_BYTES_PER_INPUT = 2 * 1024 * 1024  # ~2 MiB per input per grid step


def _round_up(x, m):
    return -(-x // m) * m


def _sharpe_loss_ref(y_true, weights, scaling_factor=252.0):
    captured = weights.astype(jnp.float32) * y_true.astype(jnp.float32)
    mean_ret = jnp.mean(captured)
    std = jnp.sqrt(jnp.mean((captured - mean_ret) ** 2) + 1e-9)
    return -(mean_ret / std * jnp.sqrt(jnp.float32(scaling_factor)))


def _partial_sums_kernel(y_ref, w_ref, o_ref, *, tile_rows, valid_rows, ragged):
    # Hot path: VPU-only elementwise product; reduction of the tile to two
    # scalars (row-wise vreg adds on the VPU + one final XLU reduce per tile).
    x = y_ref[...].astype(jnp.float32) * w_ref[...].astype(jnp.float32)
    if ragged:
        # Partial last block: rows >= valid_rows hold undefined data -> zero them.
        row0 = pl.program_id(0) * tile_rows
        rid = row0 + jax.lax.broadcasted_iota(jnp.int32, x.shape, 0)
        x = jnp.where(rid < valid_rows, x, jnp.float32(0.0))
    o_ref[0, 0] = jnp.sum(x)
    o_ref[0, 1] = jnp.sum(x * x)


def sharpe_loss(y_true, weights, scaling_factor=252.0, *,
                max_tile_rows=None, use_pallas=None):
    """Pallas TPU implementation of SharpeLoss.forward(y_true, weights)."""
    assert y_true.shape == weights.shape, "y_true and weights must match in shape"
    n = int(math.prod(y_true.shape)) if y_true.shape else 1

    if use_pallas is None:
        use_pallas = n >= _SMALL_N_THRESHOLD
    if not use_pallas:
        # Tiny-input fast path (typical batch x seq x 1 SharpeLoss case).
        return _sharpe_loss_ref(y_true, weights, scaling_factor)

    if max_tile_rows is None:
        itemsize = max(jnp.dtype(y_true.dtype).itemsize,
                       jnp.dtype(weights.dtype).itemsize)
        max_tile_rows = _TILE_BYTES_PER_INPUT // (_LANES * itemsize)  # 4096 f32 / 8192 bf16
    max_tile_rows = _round_up(int(max_tile_rows), _ROW_ALIGN)

    y_flat = jnp.reshape(y_true, (-1,))
    w_flat = jnp.reshape(weights, (-1,))

    rows = -(-n // _LANES)                         # ceil(n / 128)
    lane_pad = rows * _LANES - n
    if lane_pad:
        # Pad ONLY to the next multiple of 128 (needed for the reshape); the
        # zeros contribute nothing to either sum. No tile-multiple padding.
        y_flat = jnp.pad(y_flat, (0, lane_pad))
        w_flat = jnp.pad(w_flat, (0, lane_pad))
    y2d = jnp.reshape(y_flat, (rows, _LANES))
    w2d = jnp.reshape(w_flat, (rows, _LANES))

    tile_rows = min(max_tile_rows, _round_up(rows, _ROW_ALIGN))
    num_tiles = -(-rows // tile_rows)
    ragged = (num_tiles * tile_rows != rows)

    kernel = functools.partial(
        _partial_sums_kernel,
        tile_rows=tile_rows,
        valid_rows=rows,
        ragged=ragged,
    )

    partials = pl.pallas_call(
        kernel,
        out_shape=jax.ShapeDtypeStruct((num_tiles, 2), jnp.float32),
        grid_spec=pltpu.PrefetchScalarGridSpec(
            num_scalar_prefetch=0,
            grid=(num_tiles,),
            in_specs=[
                pl.BlockSpec((tile_rows, _LANES), lambda i: (i, 0)),
                pl.BlockSpec((tile_rows, _LANES), lambda i: (i, 0)),
            ],
            out_specs=pl.BlockSpec((1, 2), lambda i: (i, 0),
                                   memory_space=pltpu.SMEM),
        ),
        compiler_params=pltpu.CompilerParams(
            dimension_semantics=("parallel",),       # megacore split on v7x
            vmem_limit_bytes=32 * 1024 * 1024,        # headroom for big f32 tiles on v5e
        ),
    )(y2d, w2d)

    # Tiny epilogue in plain JAX: combine per-tile partials into the loss.
    s = jnp.sum(partials[:, 0])
    ss = jnp.sum(partials[:, 1])
    inv_n = jnp.float32(1.0 / n)
    mean = s * inv_n
    var = ss * inv_n - mean * mean
    std = jnp.sqrt(var + jnp.float32(1e-9))
    return -(mean / std) * jnp.float32(math.sqrt(float(scaling_factor)))


if __name__ == "__main__":
    key = jax.random.PRNGKey(0)
    k1, k2, k3, k4, k5, k6 = jax.random.split(key, 6)

    # Test 1: typical tiny SharpeLoss shape (batch=4, seq=8, output_size=1)
    # -> small-n fast path.
    y0 = jax.random.normal(k1, (4, 8, 1), dtype=jnp.float32) * 0.02
    w0 = jax.random.uniform(k2, (4, 8, 1), dtype=jnp.float32, minval=-1.0, maxval=1.0)
    l0 = jax.block_until_ready(sharpe_loss(y0, w0))
    r0 = jax.block_until_ready(_sharpe_loss_ref(y0, w0))
    assert jnp.allclose(l0, r0, rtol=1e-4, atol=1e-5), (l0, r0)

    # Test 2: Pallas path with ragged sizes (n % 128 != 0, rows % tile_rows != 0).
    y1 = jax.random.normal(k3, (16, 63, 7), dtype=jnp.float32) * 0.02
    w1 = jax.random.uniform(k4, (16, 63, 7), dtype=jnp.float32, minval=-1.0, maxval=1.0)
    r1 = jax.block_until_ready(_sharpe_loss_ref(y1, w1))
    # 2a: single (partial) tile, mask covers the tail rows.
    l1a = jax.block_until_ready(sharpe_loss(y1, w1, use_pallas=True))
    assert jnp.allclose(l1a, r1, rtol=1e-4, atol=1e-5), (l1a, r1)
    # 2b: multi-tile grid with a masked ragged last tile.
    l1b = jax.block_until_ready(sharpe_loss(y1, w1, use_pallas=True, max_tile_rows=32))
    assert jnp.allclose(l1b, r1, rtol=1e-4, atol=1e-5), (l1b, r1)

    # Test 3: fully aligned Pallas path (no pad, no mask), bf16 inputs.
    y2 = (jax.random.normal(k5, (16, 128, 2), dtype=jnp.float32) * 0.02).astype(jnp.bfloat16)
    w2 = jax.random.uniform(k6, (16, 128, 2), dtype=jnp.float32,
                            minval=-1.0, maxval=1.0).astype(jnp.bfloat16)
    l2 = jax.block_until_ready(sharpe_loss(y2, w2, use_pallas=True))
    r2 = jax.block_until_ready(_sharpe_loss_ref(y2, w2))
    assert jnp.allclose(l2, r2, rtol=1e-3, atol=1e-5), (l2, r2)

    print("KERNEL_OK")
</pallas_src>

<mosaic_0001>
module attributes {stable_mosaic.version = 11 : i64} {
  func.func @_partial_sums_kernel(%arg0: i32, %arg1: memref<64x128xf32, #tpu.memory_space<vmem>>, %arg2: memref<64x128xf32, #tpu.memory_space<vmem>>, %arg3: memref<1x2xf32, #tpu.memory_space<smem>>) attributes {dimension_semantics = [#tpu.dimension_semantics<parallel>], iteration_bounds = array<i64: 1>, scalar_prefetch = 0 : i64, scratch_operands = 0 : i64, tpu.core_type = #tpu.core_type<tc>, window_params = [{transform_indices = @transform_0, window_bounds = array<i64: 64, 128>}, {transform_indices = @transform_1, window_bounds = array<i64: 64, 128>}, {transform_indices = @transform_2, window_bounds = array<i64: 1, 2>}]} {
    %c0 = arith.constant 0 : index
    %c0_0 = arith.constant 0 : index
    %0 = vector.load %arg1[%c0, %c0_0] : memref<64x128xf32, #tpu.memory_space<vmem>>, vector<64x128xf32>
    %c0_1 = arith.constant 0 : index
    %c0_2 = arith.constant 0 : index
    %1 = vector.load %arg2[%c0_1, %c0_2] : memref<64x128xf32, #tpu.memory_space<vmem>>, vector<64x128xf32>
    %2 = arith.mulf %0, %1 : vector<64x128xf32>
    %c64_i32 = arith.constant 64 : i32
    %3 = arith.muli %arg0, %c64_i32 : i32
    %4 = tpu.iota {dimensions = array<i32: 0>} : vector<64x128xi32>
    %5 = vector.broadcast %3 : i32 to vector<64x128xi32>
    %6 = arith.addi %5, %4 : vector<64x128xi32>
    %c56_i32 = arith.constant 56 : i32
    %7 = vector.broadcast %c56_i32 : i32 to vector<64x128xi32>
    %8 = arith.cmpi slt, %6, %7 : vector<64x128xi32>
    %cst = arith.constant 0.000000e+00 : f32
    %9 = vector.broadcast %cst : f32 to vector<64x128xf32>
    %10 = arith.select %8, %2, %9 : vector<64x128xi1>, vector<64x128xf32>
    %11 = vector.shape_cast %10 : vector<64x128xf32> to vector<1x64x128xf32>
    %cst_3 = arith.constant dense<0.000000e+00> : vector<1xf32>
    %12 = vector.multi_reduction <add>, %11, %cst_3 [1, 2] : vector<1x64x128xf32> to vector<1xf32>
    %13 = vector.shape_cast %12 : vector<1xf32> to vector<1x1x1xf32>
    %14 = vector.extract %13[0, 0, 0] : f32 from vector<1x1x1xf32>
    %c0_4 = arith.constant 0 : index
    %c0_5 = arith.constant 0 : index
    %15 = memref.load %arg3[%c0_4, %c0_5] : memref<1x2xf32, #tpu.memory_space<smem>>
    memref.store %14, %arg3[%c0_4, %c0_5] : memref<1x2xf32, #tpu.memory_space<smem>>
    %16 = arith.mulf %10, %10 : vector<64x128xf32>
    %17 = vector.shape_cast %16 : vector<64x128xf32> to vector<1x64x128xf32>
    %cst_6 = arith.constant dense<0.000000e+00> : vector<1xf32>
    %18 = vector.multi_reduction <add>, %17, %cst_6 [1, 2] : vector<1x64x128xf32> to vector<1xf32>
    %19 = vector.shape_cast %18 : vector<1xf32> to vector<1x1x1xf32>
    %20 = vector.extract %19[0, 0, 0] : f32 from vector<1x1x1xf32>
    %c0_7 = arith.constant 0 : index
    %c1 = arith.constant 1 : index
    %21 = memref.load %arg3[%c0_7, %c1] : memref<1x2xf32, #tpu.memory_space<smem>>
    memref.store %20, %arg3[%c0_7, %c1] : memref<1x2xf32, #tpu.memory_space<smem>>
    return
  }
  func.func @transform_0(%arg0: i32) -> (i32, i32) {
    %c0_i32 = arith.constant 0 : i32
    %c0_i32_0 = arith.constant 0 : i32
    return %arg0, %c0_i32 : i32, i32
  }
  func.func @transform_1(%arg0: i32) -> (i32, i32) {
    %c0_i32 = arith.constant 0 : i32
    %c0_i32_0 = arith.constant 0 : i32
    return %arg0, %c0_i32 : i32, i32
  }
  func.func @transform_2(%arg0: i32) -> (i32, i32) {
    %c0_i32 = arith.constant 0 : i32
    %c0_i32_0 = arith.constant 0 : i32
    return %arg0, %c0_i32 : i32, i32
  }
}

</mosaic_0001>

<llo_original>
// kernel: tpu_custom_call.1
$region0: #{tpu_custom_call.1}
  #allocation0 [shape = 'u32[]', space=smem, size = 0x4, offset = 0x4, fixed_abs, tag = 'smem constant byte address 0x4 - core index']
  #allocation1 [shape = 'u32[72,128]{1,0:T(1,128)}', space=vmem, size = 0x9000, scoped, tag = 'internal scratch']
  %s0 = inlined_call_operand.hbm [shape: f32[56,128], index: 0, kind: input, shape index: {}]
  %s1 = inlined_call_operand.hbm [shape: f32[56,128], index: 1, kind: input, shape index: {}]
  %s2 = inlined_call_operand.hbm [shape: f32[1,2], index: 2, kind: output, shape index: {}]
  %s3 = sld [smem:[#allocation0]]
  $region26: #{tpu_custom_call.1} parent=0
    _
  %s5 = ssub.s32 1, %s3
  %s6 = scalar_select 0, %s5, %s3
  $region1: #{tpu_custom_call.1} parent=0
    #allocation2 [shape = 'u8[32768]{0}', space=vmem, size = 0x8000, scoped, tag = 'input window, operand 0, single buffered']
    #allocation3 [shape = 's32[1]{0}', space=sflag, size = 0x4, scoped, tag = 'scoped memory for tpu_custom_call.1']
    #allocation4 [shape = 's32[1]{0}', space=sflag, size = 0x4, scoped, tag = 'scoped memory for tpu_custom_call.1']
    #allocation5 [shape = 'u8[32768]{0}', space=vmem, size = 0x8000, scoped, tag = 'input window, operand 1, single buffered']
    #allocation6 [shape = 's32[1]{0}', space=sflag, size = 0x4, scoped, tag = 'scoped memory for tpu_custom_call.1']
    #allocation7 [shape = 'u8[512]{0}', space=smem, size = 0x200, scoped, tag = 'output window, operand 0, single buffered']
    %7 = vsyncpa [#allocation3], 0
    %8 = vsyncpa [#allocation6], 0
    %9 = vsyncpa [#allocation4], 0
    // Predicated region
    $region2: #{tpu_custom_call.1} parent=1 // pred_check
      _
    $region3: #{tpu_custom_call.1} parent=1 // pred_check_branch
      %11 = sbr.rel (0) target = $region5
    $region4: #{tpu_custom_call.1} parent=1 // pred_region
      %13 = vsyncadd [#allocation3], 128
      %s14 = sshll.u32 %s0, 4
      %s15 = int_to_ptr.hbm [resolvable:$true] %s14
      %s16 = sshll.u32 [#allocation2], 4
      %s17 = int_to_ptr.vmem [resolvable:$true] %s16
      %22 = dma.hbm_to_vmem [thread:$0]  %s15, 896, %s17, [#allocation3], 128, 128, 8
    $region5: #{tpu_custom_call.1} parent=1 // pred_fallthru
      _
    // Predicated region
    $region6: #{tpu_custom_call.1} parent=1 // pred_check
      _
    $region7: #{tpu_custom_call.1} parent=1 // pred_check_branch
      %24 = sbr.rel (0) target = $region9
    $region8: #{tpu_custom_call.1} parent=1 // pred_region
      %26 = vsyncadd [#allocation6], 128
      %s27 = sshll.u32 %s1, 4
      %s28 = int_to_ptr.hbm [resolvable:$true] %s27
      %s29 = sshll.u32 [#allocation5], 4
      %s30 = int_to_ptr.vmem [resolvable:$true] %s29
      %35 = dma.hbm_to_vmem [thread:$0]  %s28, 896, %s30, [#allocation6], 128, 128, 8
    $region9: #{tpu_custom_call.1} parent=1 // pred_fallthru
      _
    // Predicated region
    $region10: #{tpu_custom_call.1} parent=1 // pred_check
      _
    $region11: #{tpu_custom_call.1} parent=1 // pred_check_branch
      %37 = sbr.rel (0) target = $region13
    $region12: #{tpu_custom_call.1} parent=1 // pred_region
      %39 = dma.done [#allocation3], 1024
    $region13: #{tpu_custom_call.1} parent=1 // pred_fallthru
      _
    // Predicated region
    $region14: #{tpu_custom_call.1} parent=1 // pred_check
      _
    $region15: #{tpu_custom_call.1} parent=1 // pred_check_branch
      %41 = sbr.rel (0) target = $region17
    $region16: #{tpu_custom_call.1} parent=1 // pred_region
      %43 = dma.done [#allocation6], 1024
    $region17: #{tpu_custom_call.1} parent=1 // pred_fallthru
      _
    %v44 = vld [vmem:[#allocation2] sm:$0xff]
    %v45 = vld [vmem:[#allocation2 + $0x8] sm:$0xff]
    %v46 = vld [vmem:[#allocation2 + $0x10] sm:$0xff]
    %v47 = vld [vmem:[#allocation2 + $0x18] sm:$0xff]
    %v48 = vld [vmem:[#allocation2 + $0x20] sm:$0xff]
    %v49 = vld [vmem:[#allocation2 + $0x28] sm:$0xff]
    %v50 = vld [vmem:[#allocation2 + $0x30] sm:$0xff]
    %v51 = vld [vmem:[#allocation2 + $0x38] sm:$0xff]
    %v52 = vld [vmem:[#allocation5] sm:$0xff]
    %v53 = vld [vmem:[#allocation5 + $0x8] sm:$0xff]
    %v54 = vld [vmem:[#allocation5 + $0x10] sm:$0xff]
    %v55 = vld [vmem:[#allocation5 + $0x18] sm:$0xff]
    %v56 = vld [vmem:[#allocation5 + $0x20] sm:$0xff]
    %v57 = vld [vmem:[#allocation5 + $0x28] sm:$0xff]
    %v58 = vld [vmem:[#allocation5 + $0x30] sm:$0xff]
    %v59 = vld [vmem:[#allocation5 + $0x38] sm:$0xff]
    %v60 = vmul.f32 %v44, %v52
    %v61 = vmul.f32 %v45, %v53
    %v62 = vmul.f32 %v46, %v54
    %v63 = vmul.f32 %v47, %v55
    %v64 = vmul.f32 %v48, %v56
    %v65 = vmul.f32 %v49, %v57
    %v66 = vmul.f32 %v50, %v58
    %v67 = vmul.f32 %v51, %v59
    %s68 = smul.u32 0, 64
    %v69 = vlaneseq
    %v70 = vshrl.u32 %v69, 7
    %v71 = vadd.s32 %v70, 8
    %v72 = vadd.s32 %v70, 16
    %v73 = vadd.s32 %v70, 24
    %v74 = vadd.s32 %v70, 32
    %v75 = vadd.s32 %v70, 40
    %v76 = vadd.s32 %v70, 48
    %v77 = vadd.s32 %v70, 56
    %v78 = vstv %s68
    %v79 = vadd.s32 %v78, %v70
    %v80 = vadd.s32 %v78, %v71
    %v81 = vadd.s32 %v78, %v72
    %v82 = vadd.s32 %v78, %v73
    %v83 = vadd.s32 %v78, %v74
    %v84 = vadd.s32 %v78, %v75
    %v85 = vadd.s32 %v78, %v76
    %v86 = vadd.s32 %v78, %v77
    %vm87 = vcmp.lt.s32.totalorder %v79, 56
    %vm88 = vcmp.lt.s32.totalorder %v80, 56
    %vm89 = vcmp.lt.s32.totalorder %v81, 56
    %vm90 = vcmp.lt.s32.totalorder %v82, 56
    %vm91 = vcmp.lt.s32.totalorder %v83, 56
    %vm92 = vcmp.lt.s32.totalorder %v84, 56
    %vm93 = vcmp.lt.s32.totalorder %v85, 56
    %vm94 = vcmp.lt.s32.totalorder %v86, 56
    %v95 = vsel %vm87, %v60, 0.0
    %v96 = vsel %vm88, %v61, 0.0
    %v97 = vsel %vm89, %v62, 0.0
    %v98 = vsel %vm90, %v63, 0.0
    %v99 = vsel %vm91, %v64, 0.0
    %v100 = vsel %vm92, %v65, 0.0
    %v101 = vsel %vm93, %v66, 0.0
    %v102 = vsel %vm94, %v67, 0.0
    %v103 = vadd.f32 %v95, %v96
    %v104 = vadd.f32 %v103, %v97
    %v105 = vadd.f32 %v104, %v98
    %v106 = vadd.f32 %v105, %v99
    %v107 = vadd.f32 %v106, %v100
    %v108 = vadd.f32 %v107, %v101
    %v109 = vadd.f32 %v108, %v102
    %110 = vadd.xlane.f32.xlu0 %v109
    %v111 = vpop.xlane.xlu0 %110
    %v112 = vrot.slane %v111, 4
    %v113 = vadd.f32 %v111, %v112
    %v114 = vrot.slane %v113, 2
    %v115 = vadd.f32 %v113, %v114
    %v116 = vrot.slane %v115, 1
    %v117 = vadd.f32 %v115, %v116
    %s118 = vtos %v117
    %s119 = scalar_lea.smem [#allocation7], 0
    %120 = sst [smem:[%s119]] %s118
    %v121 = vmul.f32 %v95, %v95
    %v122 = vmul.f32 %v96, %v96
    %v123 = vmul.f32 %v97, %v97
    %v124 = vmul.f32 %v98, %v98
    %v125 = vmul.f32 %v99, %v99
    %v126 = vmul.f32 %v100, %v100
    %v127 = vmul.f32 %v101, %v101
    %v128 = vmul.f32 %v102, %v102
    %v129 = vadd.f32 %v121, %v122
    %v130 = vadd.f32 %v129, %v123
    %v131 = vadd.f32 %v130, %v124
    %v132 = vadd.f32 %v131, %v125
    %v133 = vadd.f32 %v132, %v126
    %v134 = vadd.f32 %v133, %v127
    %v135 = vadd.f32 %v134, %v128
    %136 = vadd.xlane.f32.xlu0 %v135
    %v137 = vpop.xlane.xlu0 %136
    %v138 = vrot.slane %v137, 4
    %v139 = vadd.f32 %v137, %v138
    %v140 = vrot.slane %v139, 2
    %v141 = vadd.f32 %v139, %v140
    %v142 = vrot.slane %v141, 1
    %v143 = vadd.f32 %v141, %v142
    %s144 = vtos %v143
    %s145 = scalar_lea.smem [#allocation7], 1
    %146 = sst [smem:[%s145]] %s144
    // Predicated region
    $region18: #{tpu_custom_call.1} parent=1 // pred_check
      _
    $region19: #{tpu_custom_call.1} parent=1 // pred_check_branch
      %148 = sbr.rel (0) target = $region21
    $region20: #{tpu_custom_call.1} parent=1 // pred_region
      %150 = vsyncadd [#allocation4], 0
      %s152 = sshll.u32 %s2, 4
      %s153 = int_to_ptr.hbm [resolvable:$true] %s152
      %155 = dma.smem_to_hbm [#allocation7], 16, %s153, [#allocation4]
    $region21: #{tpu_custom_call.1} parent=1 // pred_fallthru
      _
    // Predicated region
    $region22: #{tpu_custom_call.1} parent=1 // pred_check
      _
    $region23: #{tpu_custom_call.1} parent=1 // pred_check_branch
      %157 = sbr.rel (0) target = $region25
    $region24: #{tpu_custom_call.1} parent=1 // pred_region
      %159 = dma.done [#allocation4], 16
    $region25: #{tpu_custom_call.1} parent=1 // pred_fallthru
      _
    %160 = sfence
    %161 = vsyncpa [#allocation3], 1
    %162 = vsyncpa [#allocation6], 1
    %163 = vsyncpa [#allocation4], 1

</llo_original>
